<compile_context>
chip_gen: v6e
topology: v6e:2x2x1
jax: 0.10.0
libtpu: 0.0.40
codegen_flags: <defaults>
</compile_context>

<pallas_src>
import functools

import numpy as np
import jax
import jax.numpy as jnp
from jax.experimental import pallas as pl
from jax.experimental.pallas import tpu as pltpu

_BIG = 1e30  # "infinite" squared norm for padded desc2 rows


def _round_up(x: int, m: int) -> int:
    return ((x + m - 1) // m) * m


def _nn_top2_kernel(d1_ref, d1sq_ref, d2_ref, d2sq_ref,
                    dist_ref, ratio_ref, idx_ref,
                    m1_ref, m2_ref, a1_ref):
    """One (tm desc1 rows) x (tn2 desc2 rows) tile of the NN search.

    Keeps running (smallest sq-dist, 2nd smallest sq-dist, argmin) per desc1
    row in VMEM scratch across the B2 (last, 'arbitrary') grid axis.
    """
    k = pl.program_id(1)

    @pl.when(k == 0)
    def _init():
        m1_ref[...] = jnp.full_like(m1_ref, jnp.inf)
        m2_ref[...] = jnp.full_like(m2_ref, jnp.inf)
        a1_ref[...] = jnp.zeros_like(a1_ref)

    d1 = d1_ref[...]          # (tm, D)   f32
    d2 = d2_ref[...]          # (tn2, D)  f32
    d1_sq = d1sq_ref[...]     # (1, tm)   f32  (hoisted, computed in wrapper)
    d2_sq = d2sq_ref[...]     # (tn2, 1)  f32  (hoisted, computed in wrapper)

    # Transposed squared-distance tile: (tn2, tm).  MXU matmul; no sqrt here.
    # TODO(synk): optional bf16 matmul inputs for v6e/v7x once MXU-bound.
    cross = jnp.dot(d2, d1.T, preferred_element_type=jnp.float32)
    dm_sq = jnp.maximum(d2_sq + d1_sq - 2.0 * cross, 0.0)

    tn2 = dm_sq.shape[0]
    row_ids = jax.lax.broadcasted_iota(jnp.int32, dm_sq.shape, 0)

    # Local top-2 (smallest) over this desc2 tile, per desc1 row (lane).
    l1 = jnp.min(dm_sq, axis=0, keepdims=True)                        # (1, tm)
    la1 = jnp.min(jnp.where(dm_sq == l1, row_ids, tn2),
                  axis=0, keepdims=True)                              # (1, tm) i32
    l2 = jnp.min(jnp.where(row_ids == la1, jnp.inf, dm_sq),
                 axis=0, keepdims=True)                               # (1, tm)
    la1_global = la1 + k * tn2                                        # index into desc2

    # Merge with running accumulators (invariant: m1 <= m2, l1 <= l2).
    m1 = m1_ref[...]
    m2 = m2_ref[...]
    a1 = a1_ref[...]
    m1_ref[...] = jnp.minimum(m1, l1)
    m2_ref[...] = jnp.minimum(jnp.maximum(m1, l1), jnp.minimum(m2, l2))
    # Ties keep the earlier (smaller) index, matching stable topk/argsort.
    a1_ref[...] = jnp.where(l1 < m1, la1_global, a1).astype(jnp.int32)

    @pl.when(k == pl.num_programs(1) - 1)
    def _finalize():
        d1v = jnp.sqrt(m1_ref[...])        # nearest L2 distance      (1, tm)
        d2v = jnp.sqrt(m2_ref[...])        # 2nd nearest L2 distance  (1, tm)
        dist_ref[...] = d1v
        ratio_ref[...] = d1v / d2v
        idx_ref[...] = a1_ref[...]


@functools.partial(jax.jit, static_argnames=("tm_max", "tn2_max"))
def _nn_top2(desc1, desc2, tm_max: int = 256, tn2_max: int = 2048):
    """Returns (nearest L2 distance, SNN ratio, nearest index), each shape (B1,).

    tm_max / tn2_max are per-generation tile caps (multiples of 128):
    256/2048 suits v6e & v7x; prefer tm_max=128 on v5e.  Per-step VMEM
    footprint is a few MiB, well inside v7x's 64 MiB.
    """
    b1, d = desc1.shape
    b2, d2_dim = desc2.shape
    assert d == d2_dim

    tm = min(tm_max, _round_up(b1, 128))
    tn2 = min(tn2_max, _round_up(b2, 128))
    b1p = _round_up(b1, tm)
    b2p = _round_up(b2, tn2)

    d1 = desc1.astype(jnp.float32)
    d2 = desc2.astype(jnp.float32)

    # Hoisted squared norms (computed once, not once per grid step).
    d1_sq = jnp.sum(d1 * d1, axis=1)                      # (b1,)
    d2_sq = jnp.sum(d2 * d2, axis=1, keepdims=True)       # (b2, 1)

    d1_p = jnp.pad(d1, ((0, b1p - b1), (0, 0)))
    d2_p = jnp.pad(d2, ((0, b2p - b2), (0, 0)))
    d1_sq_p = jnp.pad(d1_sq, (0, b1p - b1)).reshape(1, b1p)
    # Padded desc2 rows get a huge norm -> can never enter the top-2.
    d2_sq_p = jnp.pad(d2_sq, ((0, b2p - b2), (0, 0)), constant_values=_BIG)

    grid = (b1p // tm, b2p // tn2)   # (parallel B1 tiles, arbitrary B2 tiles)

    dist, ratio, idx = pl.pallas_call(
        _nn_top2_kernel,
        out_shape=(
            jax.ShapeDtypeStruct((1, b1p), jnp.float32),   # nearest distance
            jax.ShapeDtypeStruct((1, b1p), jnp.float32),   # snn ratio
            jax.ShapeDtypeStruct((1, b1p), jnp.int32),     # nearest index
        ),
        grid_spec=pltpu.PrefetchScalarGridSpec(
            num_scalar_prefetch=0,
            grid=grid,
            in_specs=[
                pl.BlockSpec((tm, d), lambda i, k: (i, 0)),    # desc1 tile
                pl.BlockSpec((1, tm), lambda i, k: (0, i)),    # ||desc1||^2 (lane-dense)
                pl.BlockSpec((tn2, d), lambda i, k: (k, 0)),   # desc2 tile (streamed)
                pl.BlockSpec((tn2, 1), lambda i, k: (k, 0)),   # ||desc2||^2
            ],
            out_specs=[
                pl.BlockSpec((1, tm), lambda i, k: (0, i)),
                pl.BlockSpec((1, tm), lambda i, k: (0, i)),
                pl.BlockSpec((1, tm), lambda i, k: (0, i)),
            ],
            scratch_shapes=[
                pltpu.VMEM((1, tm), jnp.float32),   # running min1_sq
                pltpu.VMEM((1, tm), jnp.float32),   # running min2_sq
                pltpu.VMEM((1, tm), jnp.int32),     # running argmin
            ],
        ),
        compiler_params=pltpu.CompilerParams(
            dimension_semantics=("parallel", "arbitrary"),
            vmem_limit_bytes=48 * 1024 * 1024,
        ),
    )(d1_p, d1_sq_p, d2_p, d2_sq_p)

    return dist[0, :b1], ratio[0, :b1], idx[0, :b1]


class DescriptorMatcher:
    """JAX/Pallas port of kornia.feature.DescriptorMatcher.

    'nn' and 'snn' (default, th=0.8) run on the Pallas hot path.
    # TODO(synk): 'mnn'/'smnn' mutual-NN post-processing (dynamic-shape index
    # gymnastics) is not ported; the distance/top-2 kernel covers their hot path.
    """

    known_modes = ("nn", "snn", "mnn", "smnn")

    def __init__(self, match_mode: str = "snn", th: float = 0.8) -> None:
        _mode = match_mode.lower()
        if _mode not in self.known_modes:
            raise NotImplementedError(
                f"{match_mode} is not supported. Try one of {self.known_modes}")
        if _mode in ("mnn", "smnn"):
            raise NotImplementedError(
                f"{match_mode} is not wired to the Pallas hot path in this port")
        self.match_mode = _mode
        self.th = th

    @staticmethod
    def _no_match():
        return jnp.empty((0, 1), jnp.float32), jnp.empty((0, 2), jnp.int32)

    def __call__(self, desc1, desc2):
        b1, b2 = desc1.shape[0], desc2.shape[0]
        if b1 == 0 or b2 == 0 or (self.match_mode == "snn" and b2 < 2):
            return self._no_match()

        # Pallas hot path (jitted): distance + ratio + argmin, all on device.
        dist1, ratio, nnidx = _nn_top2(desc1, desc2)

        if self.match_mode == "nn":
            dist1 = np.asarray(dist1)
            nnidx = np.asarray(nnidx)
            match_dists = dist1.reshape(-1, 1)
            matches_idxs = np.stack([np.arange(b1), nnidx], axis=1)
            return (jnp.asarray(match_dists, jnp.float32),
                    jnp.asarray(matches_idxs, jnp.int32))

        # snn: ratio test (kornia returns the *ratio* as the match distance).
        # Dynamic-shape compaction has no static-shape Pallas equivalent.
        ratio = np.asarray(ratio)
        nnidx = np.asarray(nnidx)
        mask = ratio <= self.th
        if not mask.any():
            return self._no_match()
        match_dists = ratio[mask].reshape(-1, 1)
        matches_idxs = np.stack([np.arange(b1)[mask], nnidx[mask]], axis=1)
        return (jnp.asarray(match_dists, jnp.float32),
                jnp.asarray(matches_idxs, jnp.int32))

    # parity with nn.Module
    forward = __call__


# ----------------------------- references ---------------------------------

def _ref_dm(d1, d2):
    d1 = np.asarray(d1, np.float32)
    d2 = np.asarray(d2, np.float32)
    dm = ((d1 ** 2).sum(1, keepdims=True) + (d2 ** 2).sum(1)[None, :]
          - 2.0 * d1 @ d2.T)
    return np.sqrt(np.maximum(dm, 0.0))


def _reference_snn(desc1, desc2, th):
    dm = _ref_dm(desc1, desc2)
    order = np.argsort(dm, axis=1)
    rows = np.arange(dm.shape[0])
    v0 = dm[rows, order[:, 0]]
    v1 = dm[rows, order[:, 1]]
    ratio = v0 / v1
    mask = ratio <= th
    return ratio[mask].reshape(-1, 1), np.stack([rows[mask], order[:, 0][mask]], 1)


def _reference_nn(desc1, desc2):
    dm = _ref_dm(desc1, desc2)
    idx = dm.argmin(1)
    rows = np.arange(dm.shape[0])
    return dm[rows, idx].reshape(-1, 1), np.stack([rows, idx], 1)


if __name__ == "__main__":
    key = jax.random.PRNGKey(0)
    k1, k2, k3, k4 = jax.random.split(key, 4)

    # --- small module-level check (snn + nn) -------------------------------
    B1, B2, D = 16, 24, 32
    desc1 = jax.random.normal(k1, (B1, D), dtype=jnp.float32)
    desc2 = jax.random.normal(k2, (B2, D), dtype=jnp.float32)

    matcher = DescriptorMatcher("snn", 0.8)
    dists, idxs = matcher(desc1, desc2)
    jax.block_until_ready((dists, idxs))
    ref_d, ref_i = _reference_snn(desc1, desc2, 0.8)
    assert dists.shape == (ref_d.shape[0], 1)
    assert idxs.shape == (ref_i.shape[0], 2)
    np.testing.assert_allclose(np.asarray(dists), ref_d, rtol=1e-4, atol=1e-5)
    np.testing.assert_array_equal(np.asarray(idxs), ref_i)

    nn_d, nn_i = DescriptorMatcher("nn")(desc1, desc2)
    jax.block_until_ready((nn_d, nn_i))
    ref_nd, ref_ni = _reference_nn(desc1, desc2)
    np.testing.assert_allclose(np.asarray(nn_d), ref_nd, rtol=1e-4, atol=1e-5)
    np.testing.assert_array_equal(np.asarray(nn_i), ref_ni)

    # --- multi-tile path: >1 tile on both grid axes (accumulator merge +
    #     padding of both desc1 and desc2) ----------------------------------
    B1b, B2b, Db = 200, 500, 64
    d1b = jax.random.normal(k3, (B1b, Db), dtype=jnp.float32)
    d2b = jax.random.normal(k4, (B2b, Db), dtype=jnp.float32)
    dist1, ratio, nnidx = _nn_top2(d1b, d2b, tm_max=128, tn2_max=128)
    jax.block_until_ready((dist1, ratio, nnidx))
    dm = _ref_dm(d1b, d2b)
    order = np.argsort(dm, axis=1)
    rows = np.arange(B1b)
    v0 = dm[rows, order[:, 0]]
    v1 = dm[rows, order[:, 1]]
    np.testing.assert_allclose(np.asarray(dist1), v0, rtol=1e-4, atol=1e-4)
    np.testing.assert_allclose(np.asarray(ratio), v0 / v1, rtol=1e-4, atol=1e-4)
    np.testing.assert_array_equal(np.asarray(nnidx), order[:, 0])

    print("KERNEL_OK")
</pallas_src>

<mosaic_0001>
module attributes {stable_mosaic.version = 11 : i64} {
  func.func @_nn_top2_kernel(%arg0: i32, %arg1: i32, %arg2: memref<128x32xf32, #tpu.memory_space<vmem>>, %arg3: memref<1x128xf32, #tpu.memory_space<vmem>>, %arg4: memref<128x32xf32, #tpu.memory_space<vmem>>, %arg5: memref<128x1xf32, #tpu.memory_space<vmem>>, %arg6: memref<1x128xf32, #tpu.memory_space<vmem>>, %arg7: memref<1x128xf32, #tpu.memory_space<vmem>>, %arg8: memref<1x128xi32, #tpu.memory_space<vmem>>, %arg9: memref<1x128xf32, #tpu.memory_space<vmem>>, %arg10: memref<1x128xf32, #tpu.memory_space<vmem>>, %arg11: memref<1x128xi32, #tpu.memory_space<vmem>>) attributes {dimension_semantics = [#tpu.dimension_semantics<parallel>, #tpu.dimension_semantics<arbitrary>], iteration_bounds = array<i64: 1, 1>, scalar_prefetch = 0 : i64, scratch_operands = 3 : i64, tpu.core_type = #tpu.core_type<tc>, window_params = [{transform_indices = @transform_0, window_bounds = array<i64: 128, 32>}, {transform_indices = @transform_1, window_bounds = array<i64: 1, 128>}, {transform_indices = @transform_2, window_bounds = array<i64: 128, 32>}, {transform_indices = @transform_3, window_bounds = array<i64: 128, 1>}, {transform_indices = @transform_4, window_bounds = array<i64: 1, 128>}, {transform_indices = @transform_5, window_bounds = array<i64: 1, 128>}, {transform_indices = @transform_6, window_bounds = array<i64: 1, 128>}]} {
    %c0_i32 = arith.constant 0 : i32
    %0 = arith.cmpi eq, %arg1, %c0_i32 : i32
    %1 = arith.extui %0 : i1 to i32
    %c0_i32_0 = arith.constant 0 : i32
    %2 = arith.cmpi ne, %1, %c0_i32_0 : i32
    scf.if %2 {
      %cst_29 = arith.constant 0x7F800000 : f32
      %50 = vector.broadcast %cst_29 : f32 to vector<1x128xf32>
      %c0_30 = arith.constant 0 : index
      %c0_31 = arith.constant 0 : index
      %51 = vector.load %arg9[%c0_30, %c0_31] : memref<1x128xf32, #tpu.memory_space<vmem>>, vector<1x128xf32>
      tpu.vector_store %arg9[%c0_30, %c0_31], %50 {strides = array<i32>} : memref<1x128xf32, #tpu.memory_space<vmem>>, vector<1x128xf32>,
      %cst_32 = arith.constant 0x7F800000 : f32
      %52 = vector.broadcast %cst_32 : f32 to vector<1x128xf32>
      %c0_33 = arith.constant 0 : index
      %c0_34 = arith.constant 0 : index
      %53 = vector.load %arg10[%c0_33, %c0_34] : memref<1x128xf32, #tpu.memory_space<vmem>>, vector<1x128xf32>
      tpu.vector_store %arg10[%c0_33, %c0_34], %52 {strides = array<i32>} : memref<1x128xf32, #tpu.memory_space<vmem>>, vector<1x128xf32>,
      %c0_i32_35 = arith.constant 0 : i32
      %54 = vector.broadcast %c0_i32_35 : i32 to vector<1x128xi32>
      %c0_36 = arith.constant 0 : index
      %c0_37 = arith.constant 0 : index
      %55 = vector.load %arg11[%c0_36, %c0_37] : memref<1x128xi32, #tpu.memory_space<vmem>>, vector<1x128xi32>
      tpu.vector_store %arg11[%c0_36, %c0_37], %54 {strides = array<i32>} : memref<1x128xi32, #tpu.memory_space<vmem>>, vector<1x128xi32>,
    } else {
    }
    %c0 = arith.constant 0 : index
    %c0_1 = arith.constant 0 : index
    %3 = vector.load %arg2[%c0, %c0_1] : memref<128x32xf32, #tpu.memory_space<vmem>>, vector<128x32xf32>
    %c0_2 = arith.constant 0 : index
    %c0_3 = arith.constant 0 : index
    %4 = vector.load %arg4[%c0_2, %c0_3] : memref<128x32xf32, #tpu.memory_space<vmem>>, vector<128x32xf32>
    %c0_4 = arith.constant 0 : index
    %c0_5 = arith.constant 0 : index
    %5 = vector.load %arg3[%c0_4, %c0_5] : memref<1x128xf32, #tpu.memory_space<vmem>>, vector<1x128xf32>
    %c0_6 = arith.constant 0 : index
    %c0_7 = arith.constant 0 : index
    %6 = vector.load %arg5[%c0_6, %c0_7] : memref<128x1xf32, #tpu.memory_space<vmem>>, vector<128x1xf32>
    %7 = tpu.transpose %3, [1, 0] : vector<128x32xf32> -> vector<32x128xf32>
    %cst = arith.constant dense<0.000000e+00> : vector<128x128xf32>
    %8 = tpu.matmul %4, %7, %cst {dimension_numbers = #tpu.dot_dimension_numbers<[1], [0], [0], [1], [0, 0, 1, 1], [], []>} : vector<128x32xf32>, vector<32x128xf32>, vector<128x128xf32> -> vector<128x128xf32>
    %9 = vector.broadcast %6 : vector<128x1xf32> to vector<128x128xf32>
    %10 = vector.broadcast %5 : vector<1x128xf32> to vector<128x128xf32>
    %11 = arith.addf %9, %10 : vector<128x128xf32>
    %cst_8 = arith.constant 2.000000e+00 : f32
    %12 = vector.broadcast %cst_8 : f32 to vector<128x128xf32>
    %13 = arith.mulf %12, %8 : vector<128x128xf32>
    %14 = arith.subf %11, %13 : vector<128x128xf32>
    %cst_9 = arith.constant 0.000000e+00 : f32
    %15 = vector.broadcast %cst_9 : f32 to vector<128x128xf32>
    %16 = arith.maximumf %14, %15 : vector<128x128xf32>
    %17 = tpu.iota {dimensions = array<i32: 0>} : vector<128x128xi32>
    %cst_10 = arith.constant dense<0x7F800000> : vector<128xf32>
    %18 = vector.multi_reduction <minimumf>, %16, %cst_10 [0] : vector<128x128xf32> to vector<128xf32>
    %19 = vector.shape_cast %18 : vector<128xf32> to vector<1x128xf32>
    %20 = vector.broadcast %19 : vector<1x128xf32> to vector<128x128xf32>
    %21 = arith.cmpf oeq, %16, %20 : vector<128x128xf32>
    %c128_i32 = arith.constant 128 : i32
    %22 = vector.broadcast %c128_i32 : i32 to vector<128x128xi32>
    %23 = arith.select %21, %17, %22 : vector<128x128xi1>, vector<128x128xi32>
    %cst_11 = arith.constant dense<2147483647> : vector<128xi32>
    %24 = vector.multi_reduction <minsi>, %23, %cst_11 [0] : vector<128x128xi32> to vector<128xi32>
    %25 = vector.shape_cast %24 : vector<128xi32> to vector<1x128xi32>
    %26 = vector.broadcast %25 : vector<1x128xi32> to vector<128x128xi32>
    %27 = arith.cmpi eq, %17, %26 : vector<128x128xi32>
    %cst_12 = arith.constant 0x7F800000 : f32
    %28 = vector.broadcast %cst_12 : f32 to vector<128x128xf32>
    %29 = arith.select %27, %28, %16 : vector<128x128xi1>, vector<128x128xf32>
    %cst_13 = arith.constant dense<0x7F800000> : vector<128xf32>
    %30 = vector.multi_reduction <minimumf>, %29, %cst_13 [0] : vector<128x128xf32> to vector<128xf32>
    %31 = vector.shape_cast %30 : vector<128xf32> to vector<1x128xf32>
    %c128_i32_14 = arith.constant 128 : i32
    %32 = arith.muli %arg1, %c128_i32_14 : i32
    %33 = vector.broadcast %32 : i32 to vector<1x128xi32>
    %34 = arith.addi %25, %33 : vector<1x128xi32>
    %c0_15 = arith.constant 0 : index
    %c0_16 = arith.constant 0 : index
    %35 = vector.load %arg9[%c0_15, %c0_16] : memref<1x128xf32, #tpu.memory_space<vmem>>, vector<1x128xf32>
    %c0_17 = arith.constant 0 : index
    %c0_18 = arith.constant 0 : index
    %36 = vector.load %arg10[%c0_17, %c0_18] : memref<1x128xf32, #tpu.memory_space<vmem>>, vector<1x128xf32>
    %c0_19 = arith.constant 0 : index
    %c0_20 = arith.constant 0 : index
    %37 = vector.load %arg11[%c0_19, %c0_20] : memref<1x128xi32, #tpu.memory_space<vmem>>, vector<1x128xi32>
    %38 = arith.minimumf %35, %19 : vector<1x128xf32>
    %c0_21 = arith.constant 0 : index
    %c0_22 = arith.constant 0 : index
    %39 = vector.load %arg9[%c0_21, %c0_22] : memref<1x128xf32, #tpu.memory_space<vmem>>, vector<1x128xf32>
    tpu.vector_store %arg9[%c0_21, %c0_22], %38 {strides = array<i32>} : memref<1x128xf32, #tpu.memory_space<vmem>>, vector<1x128xf32>,
    %40 = arith.maximumf %35, %19 : vector<1x128xf32>
    %41 = arith.minimumf %36, %31 : vector<1x128xf32>
    %42 = arith.minimumf %40, %41 : vector<1x128xf32>
    %c0_23 = arith.constant 0 : index
    %c0_24 = arith.constant 0 : index
    %43 = vector.load %arg10[%c0_23, %c0_24] : memref<1x128xf32, #tpu.memory_space<vmem>>, vector<1x128xf32>
    tpu.vector_store %arg10[%c0_23, %c0_24], %42 {strides = array<i32>} : memref<1x128xf32, #tpu.memory_space<vmem>>, vector<1x128xf32>,
    %44 = arith.cmpf olt, %19, %35 : vector<1x128xf32>
    %45 = arith.select %44, %34, %37 : vector<1x128xi1>, vector<1x128xi32>
    %c0_25 = arith.constant 0 : index
    %c0_26 = arith.constant 0 : index
    %46 = vector.load %arg11[%c0_25, %c0_26] : memref<1x128xi32, #tpu.memory_space<vmem>>, vector<1x128xi32>
    tpu.vector_store %arg11[%c0_25, %c0_26], %45 {strides = array<i32>} : memref<1x128xi32, #tpu.memory_space<vmem>>, vector<1x128xi32>,
    %c0_i32_27 = arith.constant 0 : i32
    %47 = arith.cmpi eq, %arg1, %c0_i32_27 : i32
    %48 = arith.extui %47 : i1 to i32
    %c0_i32_28 = arith.constant 0 : i32
    %49 = arith.cmpi ne, %48, %c0_i32_28 : i32
    scf.if %49 {
      %c0_29 = arith.constant 0 : index
      %c0_30 = arith.constant 0 : index
      %50 = vector.load %arg9[%c0_29, %c0_30] : memref<1x128xf32, #tpu.memory_space<vmem>>, vector<1x128xf32>
      %51 = math.sqrt %50 : vector<1x128xf32>
      %c0_31 = arith.constant 0 : index
      %c0_32 = arith.constant 0 : index
      %52 = vector.load %arg10[%c0_31, %c0_32] : memref<1x128xf32, #tpu.memory_space<vmem>>, vector<1x128xf32>
      %53 = math.sqrt %52 : vector<1x128xf32>
      %c0_33 = arith.constant 0 : index
      %c0_34 = arith.constant 0 : index
      %54 = vector.load %arg6[%c0_33, %c0_34] : memref<1x128xf32, #tpu.memory_space<vmem>>, vector<1x128xf32>
      tpu.vector_store %arg6[%c0_33, %c0_34], %51 {strides = array<i32>} : memref<1x128xf32, #tpu.memory_space<vmem>>, vector<1x128xf32>,
      %55 = arith.divf %51, %53 : vector<1x128xf32>
      %c0_35 = arith.constant 0 : index
      %c0_36 = arith.constant 0 : index
      %56 = vector.load %arg7[%c0_35, %c0_36] : memref<1x128xf32, #tpu.memory_space<vmem>>, vector<1x128xf32>
      tpu.vector_store %arg7[%c0_35, %c0_36], %55 {strides = array<i32>} : memref<1x128xf32, #tpu.memory_space<vmem>>, vector<1x128xf32>,
      %c0_37 = arith.constant 0 : index
      %c0_38 = arith.constant 0 : index
      %57 = vector.load %arg11[%c0_37, %c0_38] : memref<1x128xi32, #tpu.memory_space<vmem>>, vector<1x128xi32>
      %c0_39 = arith.constant 0 : index
      %c0_40 = arith.constant 0 : index
      %58 = vector.load %arg8[%c0_39, %c0_40] : memref<1x128xi32, #tpu.memory_space<vmem>>, vector<1x128xi32>
      tpu.vector_store %arg8[%c0_39, %c0_40], %57 {strides = array<i32>} : memref<1x128xi32, #tpu.memory_space<vmem>>, vector<1x128xi32>,
    } else {
    }
    return
  }
  func.func @transform_0(%arg0: i32, %arg1: i32) -> (i32, i32) {
    %c0_i32 = arith.constant 0 : i32
    %c0_i32_0 = arith.constant 0 : i32
    return %arg0, %c0_i32 : i32, i32
  }
  func.func @transform_1(%arg0: i32, %arg1: i32) -> (i32, i32) {
    %c0_i32 = arith.constant 0 : i32
    %c0_i32_0 = arith.constant 0 : i32
    return %c0_i32, %arg0 : i32, i32
  }
  func.func @transform_2(%arg0: i32, %arg1: i32) -> (i32, i32) {
    %c0_i32 = arith.constant 0 : i32
    %c0_i32_0 = arith.constant 0 : i32
    return %arg1, %c0_i32 : i32, i32
  }
  func.func @transform_3(%arg0: i32, %arg1: i32) -> (i32, i32) {
    %c0_i32 = arith.constant 0 : i32
    %c0_i32_0 = arith.constant 0 : i32
    return %arg1, %c0_i32 : i32, i32
  }
  func.func @transform_4(%arg0: i32, %arg1: i32) -> (i32, i32) {
    %c0_i32 = arith.constant 0 : i32
    %c0_i32_0 = arith.constant 0 : i32
    return %c0_i32, %arg0 : i32, i32
  }
  func.func @transform_5(%arg0: i32, %arg1: i32) -> (i32, i32) {
    %c0_i32 = arith.constant 0 : i32
    %c0_i32_0 = arith.constant 0 : i32
    return %c0_i32, %arg0 : i32, i32
  }
  func.func @transform_6(%arg0: i32, %arg1: i32) -> (i32, i32) {
    %c0_i32 = arith.constant 0 : i32
    %c0_i32_0 = arith.constant 0 : i32
    return %c0_i32, %arg0 : i32, i32
  }
}

</mosaic_0001>

<llo_original>
// kernel: _nn_top2.1
$region0: #{_nn_top2.1}
  #allocation0 [shape = 'u32[]', space=smem, size = 0x4, offset = 0x4, fixed_abs, tag = 'smem constant byte address 0x4 - core index']
  #allocation1 [shape = 'u32[144,128]{1,0:T(1,128)}', space=vmem, size = 0x12000, scoped, tag = 'internal scratch']
  #allocation2 [shape = 'f32[1,128]{1,0:T(1,128)}', space=vmem, size = 0x200, scoped, tag = 'scratch operand']
  #allocation3 [shape = 'f32[1,128]{1,0:T(1,128)}', space=vmem, size = 0x200, scoped, tag = 'scratch operand']
  #allocation4 [shape = 's32[1,128]{1,0:T(1,128)}', space=vmem, size = 0x200, scoped, tag = 'scratch operand']
  %s0 = inlined_call_operand.vmem [shape: f32[128,32], index: 0, kind: input, shape index: {}]
  %s1 = inlined_call_operand.vmem [shape: f32[1,128], index: 1, kind: input, shape index: {}]
  %s2 = inlined_call_operand.vmem [shape: f32[128,32], index: 2, kind: input, shape index: {}]
  %s3 = inlined_call_operand.vmem [shape: f32[128,1], index: 3, kind: input, shape index: {}]
  %s4 = inlined_call_operand.vmem [shape: f32[1,128], index: 4, kind: output, shape index: {0}]
  %s5 = inlined_call_operand.vmem [shape: f32[1,128], index: 5, kind: output, shape index: {1}]
  %s6 = inlined_call_operand.vmem [shape: s32[1,128], index: 6, kind: output, shape index: {2}]
  %7 = xla_tuple %s4, %s5, %s6
  %s8 = sld [smem:[#allocation0]]
  $region50: #{_nn_top2.1} parent=0
    _
  %s10 = ssub.s32 1, %s8
  %s11 = scalar_select 0, %s10, %s8
  // Predicated region
  $region2: #{_nn_top2.1} parent=0 // pred_check
    _
  $region3: #{_nn_top2.1} parent=0 // pred_check_branch
    %13 = sbr.rel (0) target = $region5
  $region4: #{_nn_top2.1} parent=0 // pred_region
    _
  $region5: #{_nn_top2.1} parent=0 // pred_fallthru
    _
  // Predicated region
  $region6: #{_nn_top2.1} parent=0 // pred_check
    _
  $region7: #{_nn_top2.1} parent=0 // pred_check_branch
    %15 = sbr.rel (0) target = $region9
  $region8: #{_nn_top2.1} parent=0 // pred_region
    _
  $region9: #{_nn_top2.1} parent=0 // pred_fallthru
    _
  // Predicated region
  $region10: #{_nn_top2.1} parent=0 // pred_check
    _
  $region11: #{_nn_top2.1} parent=0 // pred_check_branch
    %17 = sbr.rel (0) target = $region13
  $region12: #{_nn_top2.1} parent=0 // pred_region
    _
  $region13: #{_nn_top2.1} parent=0 // pred_fallthru
    _
  // Predicated region
  $region14: #{_nn_top2.1} parent=0 // pred_check
    _
  $region15: #{_nn_top2.1} parent=0 // pred_check_branch
    %19 = sbr.rel (0) target = $region17
  $region16: #{_nn_top2.1} parent=0 // pred_region
    _
  $region17: #{_nn_top2.1} parent=0 // pred_fallthru
    _
  %p20 = scmp.eq.s32.totalorder 0, 0
  // Predicated region
  $region18: #{_nn_top2.1} parent=0 // pred_check
    %p21 = pneg %p20
  $region19: #{_nn_top2.1} parent=0 // pred_check_branch
    %23 = sbr.rel (%p21) target = $region21
  $region20: #{_nn_top2.1} parent=0 // pred_region
    %24 = vst [vmem:[#allocation2] sm:$0x1] inf
    %25 = vst [vmem:[#allocation3] sm:$0x1] inf
    %26 = vst [vmem:[#allocation4] sm:$0x1] 0
  $region21: #{_nn_top2.1} parent=0 // pred_fallthru
    _
  %v27 = vld [vmem:[%s0] sm:$0xff]
  %v28 = vld [vmem:[%s0 + $0x8] sm:$0xff]
  %v29 = vld [vmem:[%s0 + $0x10] sm:$0xff]
  %v30 = vld [vmem:[%s0 + $0x18] sm:$0xff]
  %v31 = vld [vmem:[%s0 + $0x20] sm:$0xff]
  %v32 = vld [vmem:[%s0 + $0x28] sm:$0xff]
  %v33 = vld [vmem:[%s0 + $0x30] sm:$0xff]
  %v34 = vld [vmem:[%s0 + $0x38] sm:$0xff]
  %v35 = vld [vmem:[%s0 + $0x40] sm:$0xff]
  %v36 = vld [vmem:[%s0 + $0x48] sm:$0xff]
  %v37 = vld [vmem:[%s0 + $0x50] sm:$0xff]
  %v38 = vld [vmem:[%s0 + $0x58] sm:$0xff]
  %v39 = vld [vmem:[%s0 + $0x60] sm:$0xff]
  %v40 = vld [vmem:[%s0 + $0x68] sm:$0xff]
  %v41 = vld [vmem:[%s0 + $0x70] sm:$0xff]
  %v42 = vld [vmem:[%s0 + $0x78] sm:$0xff]
  %v43 = vld [vmem:[%s2] sm:$0xff]
  %v44 = vld [vmem:[%s2 + $0x8] sm:$0xff]
  %v45 = vld [vmem:[%s2 + $0x10] sm:$0xff]
  %v46 = vld [vmem:[%s2 + $0x18] sm:$0xff]
  %v47 = vld [vmem:[%s2 + $0x20] sm:$0xff]
  %v48 = vld [vmem:[%s2 + $0x28] sm:$0xff]
  %v49 = vld [vmem:[%s2 + $0x30] sm:$0xff]
  %v50 = vld [vmem:[%s2 + $0x38] sm:$0xff]
  %v51 = vld [vmem:[%s2 + $0x40] sm:$0xff]
  %v52 = vld [vmem:[%s2 + $0x48] sm:$0xff]
  %v53 = vld [vmem:[%s2 + $0x50] sm:$0xff]
  %v54 = vld [vmem:[%s2 + $0x58] sm:$0xff]
  %v55 = vld [vmem:[%s2 + $0x60] sm:$0xff]
  %v56 = vld [vmem:[%s2 + $0x68] sm:$0xff]
  %v57 = vld [vmem:[%s2 + $0x70] sm:$0xff]
  %v58 = vld [vmem:[%s2 + $0x78] sm:$0xff]
  %v59 = vld [vmem:[%s1] sm:$0x1]
  %v60 = vld [vmem:[%s3] sm:$0xff]
  %v61 = vld [vmem:[%s3 + $0x8] sm:$0xff]
  %v62 = vld [vmem:[%s3 + $0x10] sm:$0xff]
  %v63 = vld [vmem:[%s3 + $0x18] sm:$0xff]
  %v64 = vld [vmem:[%s3 + $0x20] sm:$0xff]
  %v65 = vld [vmem:[%s3 + $0x28] sm:$0xff]
  %v66 = vld [vmem:[%s3 + $0x30] sm:$0xff]
  %v67 = vld [vmem:[%s3 + $0x38] sm:$0xff]
  %v68 = vld [vmem:[%s3 + $0x40] sm:$0xff]
  %v69 = vld [vmem:[%s3 + $0x48] sm:$0xff]
  %v70 = vld [vmem:[%s3 + $0x50] sm:$0xff]
  %v71 = vld [vmem:[%s3 + $0x58] sm:$0xff]
  %v72 = vld [vmem:[%s3 + $0x60] sm:$0xff]
  %v73 = vld [vmem:[%s3 + $0x68] sm:$0xff]
  %v74 = vld [vmem:[%s3 + $0x70] sm:$0xff]
  %v75 = vld [vmem:[%s3 + $0x78] sm:$0xff]
  %vm76 = vcmask 261120
  %v78 = vsel %vm76, %v43, 0
  %v81 = vsel %vm76, %v44, 0
  %v84 = vsel %vm76, %v45, 0
  %v87 = vsel %vm76, %v46, 0
  %v90 = vsel %vm76, %v47, 0
  %v93 = vsel %vm76, %v48, 0
  %v96 = vsel %vm76, %v49, 0
  %v99 = vsel %vm76, %v50, 0
  %v102 = vsel %vm76, %v51, 0
  %v105 = vsel %vm76, %v52, 0
  %v108 = vsel %vm76, %v53, 0
  %v111 = vsel %vm76, %v54, 0
  %v114 = vsel %vm76, %v55, 0
  %v117 = vsel %vm76, %v56, 0
  %v120 = vsel %vm76, %v57, 0
  %v123 = vsel %vm76, %v58, 0
  %v126 = vsel %vm76, %v27, 0
  %v129 = vsel %vm76, %v28, 0
  %v132 = vsel %vm76, %v29, 0
  %v135 = vsel %vm76, %v30, 0
  %v138 = vsel %vm76, %v31, 0
  %v141 = vsel %vm76, %v32, 0
  %v144 = vsel %vm76, %v33, 0
  %v147 = vsel %vm76, %v34, 0
  %v150 = vsel %vm76, %v35, 0
  %v153 = vsel %vm76, %v36, 0
  %v156 = vsel %vm76, %v37, 0
  %v159 = vsel %vm76, %v38, 0
  %v162 = vsel %vm76, %v39, 0
  %v165 = vsel %vm76, %v40, 0
  %v168 = vsel %vm76, %v41, 0
  %v171 = vsel %vm76, %v42, 0
  %173 = vmatprep.subr.mxu0 0.0
  %174 = vmatpush1.xpose.msra.mxu0 %v171
  %175 = vmatprep.subr.mxu0 0.0
  %176 = vmatpush1.xpose.msra.mxu0 %v168
  %177 = vmatprep.subr.mxu0 0.0
  %178 = vmatpush1.xpose.msra.mxu0 %v165
  %179 = vmatprep.subr.mxu0 0.0
  %180 = vmatpush1.xpose.msra.mxu0 %v162
  %181 = vmatprep.subr.mxu0 0.0
  %182 = vmatpush1.xpose.msra.mxu0 %v159
  %183 = vmatprep.subr.mxu0 0.0
  %184 = vmatpush1.xpose.msra.mxu0 %v156
  %185 = vmatprep.subr.mxu0 0.0
  %186 = vmatpush1.xpose.msra.mxu0 %v153
  %187 = vmatprep.subr.mxu0 0.0
  %188 = vmatpush1.xpose.msra.mxu0 %v150
  %189 = vmatprep.subr.mxu0 0.0
  %190 = vmatpush1.xpose.msra.mxu0 %v147
  %191 = vmatprep.subr.mxu0 0.0
  %192 = vmatpush1.xpose.msra.mxu0 %v144
  %193 = vmatprep.subr.mxu0 0.0
  %194 = vmatpush1.xpose.msra.mxu0 %v141
  %195 = vmatprep.subr.mxu0 0.0
  %196 = vmatpush1.xpose.msra.mxu0 %v138
  %197 = vmatprep.subr.mxu0 0.0
  %198 = vmatpush1.xpose.msra.mxu0 %v135
  %199 = vmatprep.subr.mxu0 0.0
  %200 = vmatpush1.xpose.msra.mxu0 %v132
  %201 = vmatprep.subr.mxu0 0.0
  %202 = vmatpush1.xpose.msra.mxu0 %v129
  %203 = vmatprep.subr.mxu0 0.0
  %204 = vmatpush1.xpose.msra.mxu0 %v126
  %205 = vmatprep.subr.mxu0 0.0
  %206 = vmatpush2.xpose.msra.mxu0 0.0
  %207 = vmatprep.subr.mxu0 0.0
  %208 = vmatpush2.xpose.msra.mxu0 0.0
  %209 = vmatprep.subr.mxu0 0.0
  %210 = vmatpush2.xpose.msra.mxu0 0.0
  %211 = vmatprep.subr.mxu0 0.0
  %212 = vmatpush2.xpose.msra.mxu0 0.0
  %213 = vmatprep.subr.mxu0 0.0
  %214 = vmatpush2.xpose.msra.mxu0 0.0
  %215 = vmatprep.subr.mxu0 0.0
  %216 = vmatpush2.xpose.msra.mxu0 0.0
  %217 = vmatprep.subr.mxu0 0.0
  %218 = vmatpush2.xpose.msra.mxu0 0.0
  %219 = vmatprep.subr.mxu0 0.0
  %220 = vmatpush2.xpose.msra.mxu0 0.0
  %221 = vmatprep.subr.mxu0 0.0
  %222 = vmatpush2.xpose.msra.mxu0 0.0
  %223 = vmatprep.subr.mxu0 0.0
  %224 = vmatpush2.xpose.msra.mxu0 0.0
  %225 = vmatprep.subr.mxu0 0.0
  %226 = vmatpush2.xpose.msra.mxu0 0.0
  %227 = vmatprep.subr.mxu0 0.0
  %228 = vmatpush2.xpose.msra.mxu0 0.0
  %229 = vmatprep.subr.mxu0 0.0
  %230 = vmatpush2.xpose.msra.mxu0 0.0
  %231 = vmatprep.subr.mxu0 0.0
  %232 = vmatpush2.xpose.msra.mxu0 0.0
  %233 = vmatprep.subr.mxu0 0.0
  %234 = vmatpush2.xpose.msra.mxu0 0.0
  %235 = vmatprep.subr.mxu0 0.0
  %236 = vmatpush2.xpose.msra.mxu0 0.0
  %237 = vmatprep.mubr.f32.mxu0 0.0
  %238 = vmatmul.mubr.f32.gmra.mxu0 %v78
  %v239 = vpop.f32.mrf.mxu0
  %v240 = vadd.f32 0.0, %v239
  %v241 = vpop.f32.mrf.mxu0
  %242 = vmatprep.mubr.f32.mxu0 0.0
  %243 = vmatmul.mubr.f32.gmra.mxu0 %v81
  %v244 = vpop.f32.mrf.mxu0
  %v245 = vadd.f32 0.0, %v244
  %v246 = vpop.f32.mrf.mxu0
  %247 = vmatprep.mubr.f32.mxu0 0.0
  %248 = vmatmul.mubr.f32.gmra.mxu0 %v84
  %v249 = vpop.f32.mrf.mxu0
  %v250 = vadd.f32 0.0, %v249
  %v251 = vpop.f32.mrf.mxu0
  %252 = vmatprep.mubr.f32.mxu0 0.0
  %253 = vmatmul.mubr.f32.gmra.mxu0 %v87
  %v254 = vpop.f32.mrf.mxu0
  %v255 = vadd.f32 0.0, %v254
  %v256 = vpop.f32.mrf.mxu0
  %257 = vmatprep.mubr.f32.mxu0 0.0
  %258 = vmatmul.mubr.f32.gmra.mxu0 %v90
  %v259 = vpop.f32.mrf.mxu0
  %v260 = vadd.f32 0.0, %v259
  %v261 = vpop.f32.mrf.mxu0
  %262 = vmatprep.mubr.f32.mxu0 0.0
  %263 = vmatmul.mubr.f32.gmra.mxu0 %v93
  %v264 = vpop.f32.mrf.mxu0
  %v265 = vadd.f32 0.0, %v264
  %v266 = vpop.f32.mrf.mxu0
  %267 = vmatprep.mubr.f32.mxu0 0.0
  %268 = vmatmul.mubr.f32.gmra.mxu0 %v96
  %v269 = vpop.f32.mrf.mxu0
  %v270 = vadd.f32 0.0, %v269
  %v271 = vpop.f32.mrf.mxu0
  %272 = vmatprep.mubr.f32.mxu0 0.0
  %273 = vmatmul.mubr.f32.gmra.mxu0 %v99
  %v274 = vpop.f32.mrf.mxu0
  %v275 = vadd.f32 0.0, %v274
  %v276 = vpop.f32.mrf.mxu0
  %277 = vmatprep.mubr.f32.mxu0 0.0
  %278 = vmatmul.mubr.f32.gmra.mxu0 %v102
  %v279 = vpop.f32.mrf.mxu0
  %v280 = vadd.f32 0.0, %v279
  %v281 = vpop.f32.mrf.mxu0
  %282 = vmatprep.mubr.f32.mxu0 0.0
  %283 = vmatmul.mubr.f32.gmra.mxu0 %v105
  %v284 = vpop.f32.mrf.mxu0
  %v285 = vadd.f32 0.0, %v284
  %v286 = vpop.f32.mrf.mxu0
  %287 = vmatprep.mubr.f32.mxu0 0.0
  %288 = vmatmul.mubr.f32.gmra.mxu0 %v108
  %v289 = vpop.f32.mrf.mxu0
  %v290 = vadd.f32 0.0, %v289
  %v291 = vpop.f32.mrf.mxu0
  %292 = vmatprep.mubr.f32.mxu0 0.0
  %293 = vmatmul.mubr.f32.gmra.mxu0 %v111
  %v294 = vpop.f32.mrf.mxu0
  %v295 = vadd.f32 0.0, %v294
  %v296 = vpop.f32.mrf.mxu0
  %297 = vmatprep.mubr.f32.mxu0 0.0
  %298 = vmatmul.mubr.f32.gmra.mxu0 %v114
  %v299 = vpop.f32.mrf.mxu0
  %v300 = vadd.f32 0.0, %v299
  %v301 = vpop.f32.mrf.mxu0
  %302 = vmatprep.mubr.f32.mxu0 0.0
  %303 = vmatmul.mubr.f32.gmra.mxu0 %v117
  %v304 = vpop.f32.mrf.mxu0
  %v305 = vadd.f32 0.0, %v304
  %v306 = vpop.f32.mrf.mxu0
  %307 = vmatprep.mubr.f32.mxu0 0.0
  %308 = vmatmul.mubr.f32.gmra.mxu0 %v120
  %v309 = vpop.f32.mrf.mxu0
  %v310 = vadd.f32 0.0, %v309
  %v311 = vpop.f32.mrf.mxu0
  %312 = vmatprep.mubr.f32.mxu0 0.0
  %313 = vmatmul.mubr.f32.gmra.mxu0 %v123
  %v314 = vpop.f32.mrf.mxu0
  %v315 = vadd.f32 0.0, %v314
  %v316 = vpop.f32.mrf.mxu0
  %317 = vdwg.mxu0
  %319 = vset.pattern.permute.xlu0 0
  %320 = vperm.xlu0 %319, %v60
  %v321 = vpop.permute.xlu0 %320
  %324 = vset.pattern.permute.xlu0 0
  %325 = vperm.xlu0 %324, %v61
  %v326 = vpop.permute.xlu0 %325
  %329 = vset.pattern.permute.xlu0 0
  %330 = vperm.xlu0 %329, %v62
  %v331 = vpop.permute.xlu0 %330
  %334 = vset.pattern.permute.xlu0 0
  %335 = vperm.xlu0 %334, %v63
  %v336 = vpop.permute.xlu0 %335
  %339 = vset.pattern.permute.xlu0 0
  %340 = vperm.xlu0 %339, %v64
  %v341 = vpop.permute.xlu0 %340
  %344 = vset.pattern.permute.xlu0 0
  %345 = vperm.xlu0 %344, %v65
  %v346 = vpop.permute.xlu0 %345
  %349 = vset.pattern.permute.xlu0 0
  %350 = vperm.xlu0 %349, %v66
  %v351 = vpop.permute.xlu0 %350
  %354 = vset.pattern.permute.xlu0 0
  %355 = vperm.xlu0 %354, %v67
  %v356 = vpop.permute.xlu0 %355
  %359 = vset.pattern.permute.xlu0 0
  %360 = vperm.xlu0 %359, %v68
  %v361 = vpop.permute.xlu0 %360
  %364 = vset.pattern.permute.xlu0 0
  %365 = vperm.xlu0 %364, %v69
  %v366 = vpop.permute.xlu0 %365
  %369 = vset.pattern.permute.xlu0 0
  %370 = vperm.xlu0 %369, %v70
  %v371 = vpop.permute.xlu0 %370
  %374 = vset.pattern.permute.xlu0 0
  %375 = vperm.xlu0 %374, %v71
  %v376 = vpop.permute.xlu0 %375
  %379 = vset.pattern.permute.xlu0 0
  %380 = vperm.xlu0 %379, %v72
  %v381 = vpop.permute.xlu0 %380
  %384 = vset.pattern.permute.xlu0 0
  %385 = vperm.xlu0 %384, %v73
  %v386 = vpop.permute.xlu0 %385
  %389 = vset.pattern.permute.xlu0 0
  %390 = vperm.xlu0 %389, %v74
  %v391 = vpop.permute.xlu0 %390
  %394 = vset.pattern.permute.xlu0 0
  %395 = vperm.xlu0 %394, %v75
  %v396 = vpop.permute.xlu0 %395
  %v399 = vlaneseq
  %v400 = vshrl.u32 %v399, 7
  %v401 = vsub.s32 0, %v400
  %v402 = vrot.slane %v59, %v401
  %v404 = vadd.f32 %v321, %v402
  %v405 = vadd.f32 %v326, %v402
  %v406 = vadd.f32 %v331, %v402
  %v407 = vadd.f32 %v336, %v402
  %v408 = vadd.f32 %v341, %v402
  %v409 = vadd.f32 %v346, %v402
  %v410 = vadd.f32 %v351, %v402
  %v411 = vadd.f32 %v356, %v402
  %v412 = vadd.f32 %v361, %v402
  %v413 = vadd.f32 %v366, %v402
  %v414 = vadd.f32 %v371, %v402
  %v415 = vadd.f32 %v376, %v402
  %v416 = vadd.f32 %v381, %v402
  %v417 = vadd.f32 %v386, %v402
  %v418 = vadd.f32 %v391, %v402
  %v419 = vadd.f32 %v396, %v402
  %v420 = vmul.f32 %v240, 2.0
  %v421 = vmul.f32 %v245, 2.0
  %v422 = vmul.f32 %v250, 2.0
  %v423 = vmul.f32 %v255, 2.0
  %v424 = vmul.f32 %v260, 2.0
  %v425 = vmul.f32 %v265, 2.0
  %v426 = vmul.f32 %v270, 2.0
  %v427 = vmul.f32 %v275, 2.0
  %v428 = vmul.f32 %v280, 2.0
  %v429 = vmul.f32 %v285, 2.0
  %v430 = vmul.f32 %v290, 2.0
  %v431 = vmul.f32 %v295, 2.0
  %v432 = vmul.f32 %v300, 2.0
  %v433 = vmul.f32 %v305, 2.0
  %v434 = vmul.f32 %v310, 2.0
  %v435 = vmul.f32 %v315, 2.0
  %v436 = vsub.f32 %v404, %v420
  %v437 = vsub.f32 %v405, %v421
  %v438 = vsub.f32 %v406, %v422
  %v439 = vsub.f32 %v407, %v423
  %v440 = vsub.f32 %v408, %v424
  %v441 = vsub.f32 %v409, %v425
  %v442 = vsub.f32 %v410, %v426
  %v443 = vsub.f32 %v411, %v427
  %v444 = vsub.f32 %v412, %v428
  %v445 = vsub.f32 %v413, %v429
  %v446 = vsub.f32 %v414, %v430
  %v447 = vsub.f32 %v415, %v431
  %v448 = vsub.f32 %v416, %v432
  %v449 = vsub.f32 %v417, %v433
  %v450 = vsub.f32 %v418, %v434
  %v451 = vsub.f32 %v419, %v435
  %v452 = vmax.f32 %v436, 0.0
  %v453 = vmax.f32 %v437, 0.0
  %v454 = vmax.f32 %v438, 0.0
  %v455 = vmax.f32 %v439, 0.0
  %v456 = vmax.f32 %v440, 0.0
  %v457 = vmax.f32 %v441, 0.0
  %v458 = vmax.f32 %v442, 0.0
  %v459 = vmax.f32 %v443, 0.0
  %v460 = vmax.f32 %v444, 0.0
  %v461 = vmax.f32 %v445, 0.0
  %v462 = vmax.f32 %v446, 0.0
  %v463 = vmax.f32 %v447, 0.0
  %v464 = vmax.f32 %v448, 0.0
  %v465 = vmax.f32 %v449, 0.0
  %v466 = vmax.f32 %v450, 0.0
  %v467 = vmax.f32 %v451, 0.0
  %v468 = vlaneseq
  %v469 = vshrl.u32 %v468, 7
  %v470 = vadd.s32 %v469, 8
  %v471 = vadd.s32 %v469, 16
  %v472 = vadd.s32 %v469, 24
  %v473 = vadd.s32 %v469, 32
  %v474 = vadd.s32 %v469, 40
  %v475 = vadd.s32 %v469, 48
  %v476 = vadd.s32 %v469, 56
  %v477 = vadd.s32 %v469, 64
  %v478 = vadd.s32 %v469, 72
  %v479 = vadd.s32 %v469, 80
  %v480 = vadd.s32 %v469, 88
  %v481 = vadd.s32 %v469, 96
  %v482 = vadd.s32 %v469, 104
  %v483 = vadd.s32 %v469, 112
  %v484 = vadd.s32 %v469, 120
  %v485 = vmin.f32 %v452, %v456
  %v486 = vmin.f32 %v453, %v457
  %v487 = vmin.f32 %v454, %v458
  %v488 = vmin.f32 %v455, %v459
  %v489 = vmin.f32 %v485, %v460
  %v490 = vmin.f32 %v486, %v461
  %v491 = vmin.f32 %v487, %v462
  %v492 = vmin.f32 %v488, %v463
  %v493 = vmin.f32 %v489, %v464
  %v494 = vmin.f32 %v490, %v465
  %v495 = vmin.f32 %v491, %v466
  %v496 = vmin.f32 %v492, %v467
  %v497 = vmin.f32 %v493, %v494
  %v498 = vmin.f32 %v495, %v496
  %v499 = vmin.f32 %v497, %v498
  %v500 = vrot.slane %v499, 4
  %v501 = vmin.f32 %v499, %v500
  %v502 = vrot.slane %v501, 2
  %v503 = vmin.f32 %v501, %v502
  %v504 = vrot.slane %v503, 1
  %v505 = vmin.f32 %v503, %v504
  %vm506 = vcmp.eq.f32.partialorder %v452, %v505
  %vm507 = vcmp.eq.f32.partialorder %v453, %v505
  %vm508 = vcmp.eq.f32.partialorder %v454, %v505
  %vm509 = vcmp.eq.f32.partialorder %v455, %v505
  %vm510 = vcmp.eq.f32.partialorder %v456, %v505
  %vm511 = vcmp.eq.f32.partialorder %v457, %v505
  %vm512 = vcmp.eq.f32.partialorder %v458, %v505
  %vm513 = vcmp.eq.f32.partialorder %v459, %v505
  %vm514 = vcmp.eq.f32.partialorder %v460, %v505
  %vm515 = vcmp.eq.f32.partialorder %v461, %v505
  %vm516 = vcmp.eq.f32.partialorder %v462, %v505
  %vm517 = vcmp.eq.f32.partialorder %v463, %v505
  %vm518 = vcmp.eq.f32.partialorder %v464, %v505
  %vm519 = vcmp.eq.f32.partialorder %v465, %v505
  %vm520 = vcmp.eq.f32.partialorder %v466, %v505
  %vm521 = vcmp.eq.f32.partialorder %v467, %v505
  %v522 = vsel %vm506, %v469, 128
  %v523 = vsel %vm507, %v470, 128
  %v524 = vsel %vm508, %v471, 128
  %v525 = vsel %vm509, %v472, 128
  %v526 = vsel %vm510, %v473, 128
  %v527 = vsel %vm511, %v474, 128
  %v528 = vsel %vm512, %v475, 128
  %v529 = vsel %vm513, %v476, 128
  %v530 = vsel %vm514, %v477, 128
  %v531 = vsel %vm515, %v478, 128
  %v532 = vsel %vm516, %v479, 128
  %v533 = vsel %vm517, %v480, 128
  %v534 = vsel %vm518, %v481, 128
  %v535 = vsel %vm519, %v482, 128
  %v536 = vsel %vm520, %v483, 128
  %v537 = vsel %vm521, %v484, 128
  %vm538 = vcmp.lt.s32.totalorder %v522, %v526
  %v539 = vsel %vm538, %v522, %v526
  %vm540 = vcmp.lt.s32.totalorder %v523, %v527
  %v541 = vsel %vm540, %v523, %v527
  %vm542 = vcmp.lt.s32.totalorder %v524, %v528
  %v543 = vsel %vm542, %v524, %v528
  %vm544 = vcmp.lt.s32.totalorder %v525, %v529
  %v545 = vsel %vm544, %v525, %v529
  %vm546 = vcmp.lt.s32.totalorder %v539, %v530
  %v547 = vsel %vm546, %v539, %v530
  %vm548 = vcmp.lt.s32.totalorder %v541, %v531
  %v549 = vsel %vm548, %v541, %v531
  %vm550 = vcmp.lt.s32.totalorder %v543, %v532
  %v551 = vsel %vm550, %v543, %v532
  %vm552 = vcmp.lt.s32.totalorder %v545, %v533
  %v553 = vsel %vm552, %v545, %v533
  %vm554 = vcmp.lt.s32.totalorder %v547, %v534
  %v555 = vsel %vm554, %v547, %v534
  %vm556 = vcmp.lt.s32.totalorder %v549, %v535
  %v557 = vsel %vm556, %v549, %v535
  %vm558 = vcmp.lt.s32.totalorder %v551, %v536
  %v559 = vsel %vm558, %v551, %v536
  %vm560 = vcmp.lt.s32.totalorder %v553, %v537
  %v561 = vsel %vm560, %v553, %v537
  %vm562 = vcmp.lt.s32.totalorder %v555, %v557
  %v563 = vsel %vm562, %v555, %v557
  %vm564 = vcmp.lt.s32.totalorder %v559, %v561
  %v565 = vsel %vm564, %v559, %v561
  %vm566 = vcmp.lt.s32.totalorder %v563, %v565
  %v567 = vsel %vm566, %v563, %v565
  %v568 = vrot.slane %v567, 4
  %vm569 = vcmp.lt.s32.totalorder %v567, %v568
  %v570 = vsel %vm569, %v567, %v568
  %v571 = vrot.slane %v570, 2
  %vm572 = vcmp.lt.s32.totalorder %v570, %v571
  %v573 = vsel %vm572, %v570, %v571
  %v574 = vrot.slane %v573, 1
  %vm575 = vcmp.lt.s32.totalorder %v573, %v574
  %v576 = vsel %vm575, %v573, %v574
  %vm577 = vcmp.eq.s32.totalorder %v469, %v576
  %vm578 = vcmp.eq.s32.totalorder %v470, %v576
  %vm579 = vcmp.eq.s32.totalorder %v471, %v576
  %vm580 = vcmp.eq.s32.totalorder %v472, %v576
  %vm581 = vcmp.eq.s32.totalorder %v473, %v576
  %vm582 = vcmp.eq.s32.totalorder %v474, %v576
  %vm583 = vcmp.eq.s32.totalorder %v475, %v576
  %vm584 = vcmp.eq.s32.totalorder %v476, %v576
  %vm585 = vcmp.eq.s32.totalorder %v477, %v576
  %vm586 = vcmp.eq.s32.totalorder %v478, %v576
  %vm587 = vcmp.eq.s32.totalorder %v479, %v576
  %vm588 = vcmp.eq.s32.totalorder %v480, %v576
  %vm589 = vcmp.eq.s32.totalorder %v481, %v576
  %vm590 = vcmp.eq.s32.totalorder %v482, %v576
  %vm591 = vcmp.eq.s32.totalorder %v483, %v576
  %vm592 = vcmp.eq.s32.totalorder %v484, %v576
  %v593 = vsel %vm577, inf, %v452
  %v594 = vsel %vm578, inf, %v453
  %v595 = vsel %vm579, inf, %v454
  %v596 = vsel %vm580, inf, %v455
  %v597 = vsel %vm581, inf, %v456
  %v598 = vsel %vm582, inf, %v457
  %v599 = vsel %vm583, inf, %v458
  %v600 = vsel %vm584, inf, %v459
  %v601 = vsel %vm585, inf, %v460
  %v602 = vsel %vm586, inf, %v461
  %v603 = vsel %vm587, inf, %v462
  %v604 = vsel %vm588, inf, %v463
  %v605 = vsel %vm589, inf, %v464
  %v606 = vsel %vm590, inf, %v465
  %v607 = vsel %vm591, inf, %v466
  %v608 = vsel %vm592, inf, %v467
  %v609 = vmin.f32 %v593, %v597
  %v610 = vmin.f32 %v594, %v598
  %v611 = vmin.f32 %v595, %v599
  %v612 = vmin.f32 %v596, %v600
  %v613 = vmin.f32 %v609, %v601
  %v614 = vmin.f32 %v610, %v602
  %v615 = vmin.f32 %v611, %v603
  %v616 = vmin.f32 %v612, %v604
  %v617 = vmin.f32 %v613, %v605
  %v618 = vmin.f32 %v614, %v606
  %v619 = vmin.f32 %v615, %v607
  %v620 = vmin.f32 %v616, %v608
  %v621 = vmin.f32 %v617, %v618
  %v622 = vmin.f32 %v619, %v620
  %v623 = vmin.f32 %v621, %v622
  %v624 = vrot.slane %v623, 4
  %v625 = vmin.f32 %v623, %v624
  %v626 = vrot.slane %v625, 2
  %v627 = vmin.f32 %v625, %v626
  %v628 = vrot.slane %v627, 1
  %v629 = vmin.f32 %v627, %v628
  %s630 = smul.u32 0, 128
  %v631 = vstv %s630
  %v632 = vadd.s32 %v576, %v631
  %v633 = vld [vmem:[#allocation2] sm:$0x1]
  %v634 = vld [vmem:[#allocation3] sm:$0x1]
  %v635 = vld [vmem:[#allocation4] sm:$0x1]
  %v636 = vmin.f32 %v633, %v505
  %637 = vst [vmem:[#allocation2] sm:$0x1] %v636
  %v638 = vmax.f32 %v633, %v505
  %v639 = vmin.f32 %v634, %v629
  %v640 = vmin.f32 %v638, %v639
  %641 = vst [vmem:[#allocation3] sm:$0x1] %v640
  %vm642 = vcmp.lt.f32.partialorder %v505, %v633
  %v643 = vsel %vm642, %v632, %v635
  %644 = vst [vmem:[#allocation4] sm:$0x1] %v643
  // Predicated region
  $region22: #{_nn_top2.1} parent=0 // pred_check
    %p645 = pneg %p20
  $region23: #{_nn_top2.1} parent=0 // pred_check_branch
    %647 = sbr.rel (%p645) target = $region25
  $region24: #{_nn_top2.1} parent=0 // pred_region
    %v648 = vld [vmem:[#allocation2] sm:$0x1]
    %v649 = vrsqrt.pop %v648
    %v650 = vmul.f32 %v648, %v649
    %vm651 = vcmp.eq.f32.partialorder %v648, inf
    %v652 = vsel %vm651, %v648, %v650
    %vm653 = vcmp.eq.f32.partialorder %v648, 0.0
    %v654 = vand.u32 %v648, 2147483648
    %v655 = vsel %vm653, %v654, %v652
    %v656 = vld [vmem:[#allocation3] sm:$0x1]
    %v657 = vrsqrt.pop %v656
    %v658 = vmul.f32 %v656, %v657
    %vm659 = vcmp.eq.f32.partialorder %v656, inf
    %v660 = vsel %vm659, %v656, %v658
    %vm661 = vcmp.eq.f32.partialorder %v656, 0.0
    %v662 = vand.u32 %v656, 2147483648
    %v663 = vsel %vm661, %v662, %v660
    %664 = vst [vmem:[%s4] sm:$0x1] %v655
    %v665 = vrcp.pop %v663
    %v666 = vmul.f32 %v655, %v665
    %667 = vst [vmem:[%s5] sm:$0x1] %v666
    %v668 = vld [vmem:[#allocation4] sm:$0x1]
    %669 = vst [vmem:[%s6] sm:$0x1] %v668
  $region25: #{_nn_top2.1} parent=0 // pred_fallthru
    _
  // Predicated region
  $region26: #{_nn_top2.1} parent=0 // pred_check
    _
  $region27: #{_nn_top2.1} parent=0 // pred_check_branch
    %671 = sbr.rel (0) target = $region29
  $region28: #{_nn_top2.1} parent=0 // pred_region
    _
  $region29: #{_nn_top2.1} parent=0 // pred_fallthru
    _
  // Predicated region
  $region30: #{_nn_top2.1} parent=0 // pred_check
    _
  $region31: #{_nn_top2.1} parent=0 // pred_check_branch
    %673 = sbr.rel (0) target = $region33
  $region32: #{_nn_top2.1} parent=0 // pred_region
    _
  $region33: #{_nn_top2.1} parent=0 // pred_fallthru
    _
  // Predicated region
  $region34: #{_nn_top2.1} parent=0 // pred_check
    _
  $region35: #{_nn_top2.1} parent=0 // pred_check_branch
    %675 = sbr.rel (0) target = $region37
  $region36: #{_nn_top2.1} parent=0 // pred_region
    _
  $region37: #{_nn_top2.1} parent=0 // pred_fallthru
    _
  // Predicated region
  $region38: #{_nn_top2.1} parent=0 // pred_check
    _
  $region39: #{_nn_top2.1} parent=0 // pred_check_branch
    %677 = sbr.rel (0) target = $region41
  $region40: #{_nn_top2.1} parent=0 // pred_region
    _
  $region41: #{_nn_top2.1} parent=0 // pred_fallthru
    _
  // Predicated region
  $region42: #{_nn_top2.1} parent=0 // pred_check
    _
  $region43: #{_nn_top2.1} parent=0 // pred_check_branch
    %679 = sbr.rel (0) target = $region45
  $region44: #{_nn_top2.1} parent=0 // pred_region
    _
  $region45: #{_nn_top2.1} parent=0 // pred_fallthru
    _
  // Predicated region
  $region46: #{_nn_top2.1} parent=0 // pred_check
    _
  $region47: #{_nn_top2.1} parent=0 // pred_check_branch
    %681 = sbr.rel (0) target = $region49
  $region48: #{_nn_top2.1} parent=0 // pred_region
    _
  $region49: #{_nn_top2.1} parent=0 // pred_fallthru
    _

</llo_original>
